<compile_context>
chip_gen: v6e
topology: v6e:2x2x1
jax: 0.10.0
libtpu: 0.0.40
codegen_flags: <defaults>
</compile_context>

<pallas_src>
import jax
import jax.numpy as jnp
from jax.experimental import pallas as pl
from jax.experimental.pallas import tpu as pltpu

_LANES = 128  # edges per lane-row


def _round_up(x, m):
    return ((x + m - 1) // m) * m


def _ceil_div(a, b):
    return (a + b - 1) // b


# ----------------------------------------------------------------------------
# Kernel: fused  relu(pre) . w2 + b2  over a (H, tile_edges) block.
# ----------------------------------------------------------------------------
def _edge_score_kernel(w2_ref, b2_ref, pre_ref, o_ref):
    # w2_ref : (H, 1)  f32 VMEM column (constant across the grid)
    # b2_ref : (1,)    f32 SMEM scalar
    # pre_ref: (H, TE) pre-activation slab block (edges on lanes, H on sublanes)
    # o_ref  : (1, TE) lane-dense per-edge logits
    pre = pre_ref[...].astype(jnp.float32)          # f32 accumulate (bf16 path upcasts)
    h = jnp.maximum(pre, 0.0)                        # ReLU (VPU)
    # Second Linear (H -> 1) as a VPU multiply + cross-sublane reduce (XLU);
    # result is already lane-dense per edge — no 1-column masked store.
    s = jnp.sum(h * w2_ref[...], axis=0, keepdims=True)   # (1, TE)
    o_ref[...] = (s + b2_ref[0]).astype(o_ref.dtype)


def _edge_score_pallas(pre_t, w2, b2, *, tile_edges):
    """Fused relu(pre_t) . w2 + b2.  pre_t: [H, E_pad], returns [E_pad] f32."""
    H, E_pad = pre_t.shape
    assert E_pad % tile_edges == 0 and tile_edges % _LANES == 0

    n_steps = E_pad // tile_edges
    w2_col = w2.reshape(H, 1).astype(jnp.float32)
    b2_s = b2.reshape(1).astype(jnp.float32)

    out = pl.pallas_call(
        _edge_score_kernel,
        out_shape=jax.ShapeDtypeStruct((1, E_pad), jnp.float32),
        grid_spec=pltpu.PrefetchScalarGridSpec(
            num_scalar_prefetch=0,
            grid=(n_steps,),
            in_specs=[
                pl.BlockSpec((H, 1), lambda i: (0, 0)),              # w2 (DMA'd once)
                pl.BlockSpec(memory_space=pltpu.MemorySpace.SMEM),   # b2 scalar
                pl.BlockSpec((H, tile_edges), lambda i: (0, i)),     # slab block
            ],
            out_specs=pl.BlockSpec((1, tile_edges), lambda i: (0, i)),
        ),
        compiler_params=pltpu.CompilerParams(
            dimension_semantics=("parallel",),
            vmem_limit_bytes=32 * 1024 * 1024,   # safe on v5e/v6e (128 MiB) and v7x (64 MiB)
        ),
    )(w2_col, b2_s, pre_t)

    return out.reshape(E_pad)


# ----------------------------------------------------------------------------
# Tiling heuristic.
# ----------------------------------------------------------------------------
def _pick_tile_edges(E, H, elem_bytes, *,
                     vmem_budget_bytes=16 * 1024 * 1024, min_steps=2):
    """Edges per grid step: as large as the VMEM budget allows, but never far
    larger than the problem, and leaving >= min_steps steps for v7x megacore."""
    # Per-edge VMEM working set: double-buffered input block + ~3 in-kernel f32
    # temporaries (cast / relu / mul) + double-buffered f32 output block.
    per_edge = 2 * H * elem_bytes + 3 * H * 4 + 2 * 4
    te_budget = max(_LANES, (vmem_budget_bytes // per_edge) // _LANES * _LANES)

    e128 = _round_up(max(E, 1), _LANES)
    te_problem = max(_LANES, _round_up(_ceil_div(e128, min_steps), _LANES))
    return min(te_budget, te_problem, e128)


# ----------------------------------------------------------------------------
# Forward.
# ----------------------------------------------------------------------------
def sampling_forward(x, edge_index, params, edge_feature=None, *,
                     tile_edges=None, slab_dtype=jnp.float32):
    """JAX/Pallas equivalent of Sampling.forward. Returns [E, 1] logits."""
    w1, b1, w2, b2 = params
    N, D = x.shape
    H = w1.shape[1]
    Fe = 0 if edge_feature is None else edge_feature.shape[-1]
    if w1.shape[0] != 2 * D + Fe:
        raise ValueError(
            f"w1 expects input_dim={w1.shape[0]}, got 2*D + Fe = {2 * D + Fe}")

    src, dst = edge_index[0], edge_index[1]
    E = src.shape[0]

    # --- node-level projections (N rows, not E), kept TRANSPOSED so the edge
    #     axis later lands on lanes -------------------------------------------
    proj_src_t = (x @ w1[:D, :] + b1).T          # [H, N], b1 folded exactly once
    proj_dst_t = (x @ w1[D:2 * D, :]).T          # [H, N]

    # --- tile sizing ---------------------------------------------------------
    elem_bytes = jnp.dtype(slab_dtype).itemsize
    if tile_edges is None:
        tile_edges = _pick_tile_edges(E, H, elem_bytes)
        # Rebalance: same number of grid steps, minimal padding (< 128 edges/step).
        n_steps = _ceil_div(max(E, 1), tile_edges)
        tile_edges = _round_up(_ceil_div(max(E, 1), n_steps), _LANES)
    else:
        tile_edges = _round_up(tile_edges, _LANES)
    E_pad = _round_up(max(E, 1), tile_edges)
    pad = E_pad - E

    # --- single pre-summed slab, built directly in [H, E_pad] layout ---------
    # XLA fuses both column-gathers + add (+ edge_feature projection) into one
    # output slab, so only one E*H array is written to / read from HBM.
    src_p = jnp.pad(src, (0, pad))               # pad with node 0 → valid gathers
    dst_p = jnp.pad(dst, (0, pad))
    pre_t = (jnp.take(proj_src_t, src_p, axis=1)
             + jnp.take(proj_dst_t, dst_p, axis=1))          # [H, E_pad]

    if edge_feature is not None:
        proj_ef_t = (edge_feature @ w1[2 * D:2 * D + Fe, :]).T   # [H, E]
        pre_t = pre_t + jnp.pad(proj_ef_t, ((0, 0), (0, pad)))

    pre_t = pre_t.astype(slab_dtype)             # optional bf16 HBM path

    logits = _edge_score_pallas(pre_t, w2, b2, tile_edges=tile_edges)
    return logits[:E].reshape(E, 1)


# ----------------------------------------------------------------------------
# Params / reference.
# ----------------------------------------------------------------------------
def init_params(key, input_dim, hidden_dim, dtype=jnp.float32):
    """Deterministic synthetic init mirroring the nn.Linear shapes ([in, out])."""
    k1, k2, k3, k4 = jax.random.split(key, 4)
    s1 = 1.0 / (input_dim ** 0.5)
    s2 = 1.0 / (hidden_dim ** 0.5)
    w1 = jax.random.uniform(k1, (input_dim, hidden_dim), dtype, -s1, s1)
    b1 = jax.random.uniform(k2, (hidden_dim,), dtype, -s1, s1)
    w2 = jax.random.uniform(k3, (hidden_dim, 1), dtype, -s2, s2)
    b2 = jax.random.uniform(k4, (1,), dtype, -s2, s2)
    return (w1, b1, w2, b2)


def reference_forward(x, edge_index, params, edge_feature=None):
    """Pure-JAX reference matching the PyTorch module."""
    w1, b1, w2, b2 = params
    src, dst = edge_index[0], edge_index[1]
    parts = [x[src], x[dst]]
    if edge_feature is not None:
        parts.append(edge_feature)
    e = jnp.concatenate(parts, axis=-1)
    return jnp.maximum(e @ w1 + b1, 0.0) @ w2 + b2


if __name__ == "__main__":
    # Small shapes consistent with the module:
    #   node feature dim D = 16, hidden_dim = 32, N = 10 nodes, E = 8 edges.
    D, HIDDEN = 16, 32
    N, E = 10, 8

    key = jax.random.PRNGKey(0)
    kx, ke, kf, kp1, kp2 = jax.random.split(key, 5)

    x = jax.random.normal(kx, (N, D), jnp.float32)
    edge_index = jax.random.randint(ke, (2, E), 0, N, jnp.int32)

    # Path 1: no edge_feature (input_dim = 2*D).
    params = init_params(kp1, 2 * D, HIDDEN)
    logits = jax.block_until_ready(sampling_forward(x, edge_index, params))
    ref = reference_forward(x, edge_index, params)
    assert logits.shape == (E, 1)
    assert jnp.allclose(logits, ref, atol=1e-4, rtol=1e-4)

    # Path 2: with edge_feature (input_dim = 2*D + Fe).
    FE = 8
    edge_feature = jax.random.normal(kf, (E, FE), jnp.float32)
    params2 = init_params(kp2, 2 * D + FE, HIDDEN)
    logits2 = jax.block_until_ready(
        sampling_forward(x, edge_index, params2, edge_feature))
    ref2 = reference_forward(x, edge_index, params2, edge_feature)
    assert logits2.shape == (E, 1)
    assert jnp.allclose(logits2, ref2, atol=1e-4, rtol=1e-4)

    # Path 3: bf16 HBM slab (f32 accumulation in-kernel) — bandwidth option.
    logits_bf16 = jax.block_until_ready(
        sampling_forward(x, edge_index, params, slab_dtype=jnp.bfloat16))
    assert logits_bf16.shape == (E, 1)
    assert jnp.allclose(logits_bf16, ref, atol=1e-1, rtol=1e-1)

    print("KERNEL_OK")
</pallas_src>

<mosaic_0001>
module attributes {stable_mosaic.version = 11 : i64} {
  func.func @_edge_score_kernel(%arg0: i32, %arg1: memref<32x1xf32, #tpu.memory_space<vmem>>, %arg2: memref<1xf32, #tpu.memory_space<smem>>, %arg3: memref<32x128xf32, #tpu.memory_space<vmem>>, %arg4: memref<1x128xf32, #tpu.memory_space<vmem>>) attributes {dimension_semantics = [#tpu.dimension_semantics<parallel>], iteration_bounds = array<i64: 1>, scalar_prefetch = 0 : i64, scratch_operands = 0 : i64, tpu.core_type = #tpu.core_type<tc>, window_params = [{pipeline_mode = #tpu.pipeline_mode<synchronous>, transform_indices = @transform_0, window_bounds = array<i64: 32, 1>}, {transform_indices = @transform_1, window_bounds = array<i64: 1>}, {transform_indices = @transform_2, window_bounds = array<i64: 32, 128>}, {transform_indices = @transform_3, window_bounds = array<i64: 1, 128>}]} {
    %c0 = arith.constant 0 : index
    %c0_0 = arith.constant 0 : index
    %0 = vector.load %arg3[%c0, %c0_0] : memref<32x128xf32, #tpu.memory_space<vmem>>, vector<32x128xf32>
    %cst = arith.constant 0.000000e+00 : f32
    %1 = vector.broadcast %cst : f32 to vector<32x128xf32>
    %2 = arith.maximumf %0, %1 : vector<32x128xf32>
    %c0_1 = arith.constant 0 : index
    %c0_2 = arith.constant 0 : index
    %3 = vector.load %arg1[%c0_1, %c0_2] : memref<32x1xf32, #tpu.memory_space<vmem>>, vector<32x1xf32>
    %4 = vector.broadcast %3 : vector<32x1xf32> to vector<32x128xf32>
    %5 = arith.mulf %2, %4 : vector<32x128xf32>
    %cst_3 = arith.constant dense<0.000000e+00> : vector<128xf32>
    %6 = vector.multi_reduction <add>, %5, %cst_3 [0] : vector<32x128xf32> to vector<128xf32>
    %7 = vector.shape_cast %6 : vector<128xf32> to vector<1x128xf32>
    %c0_4 = arith.constant 0 : index
    %8 = memref.load %arg2[%c0_4] : memref<1xf32, #tpu.memory_space<smem>>
    %9 = vector.broadcast %8 : f32 to vector<1x128xf32>
    %10 = arith.addf %7, %9 : vector<1x128xf32>
    %c0_5 = arith.constant 0 : index
    %c0_6 = arith.constant 0 : index
    %11 = vector.load %arg4[%c0_5, %c0_6] : memref<1x128xf32, #tpu.memory_space<vmem>>, vector<1x128xf32>
    tpu.vector_store %arg4[%c0_5, %c0_6], %10 {strides = array<i32>} : memref<1x128xf32, #tpu.memory_space<vmem>>, vector<1x128xf32>,
    return
  }
  func.func @transform_0(%arg0: i32) -> (i32, i32) {
    %c0_i32 = arith.constant 0 : i32
    %c0_i32_0 = arith.constant 0 : i32
    %c0_i32_1 = arith.constant 0 : i32
    return %c0_i32, %c0_i32_0 : i32, i32
  }
  func.func @transform_1(%arg0: i32) -> i32 {
    %c0_i32 = arith.constant 0 : i32
    %c0_i32_0 = arith.constant 0 : i32
    return %c0_i32 : i32
  }
  func.func @transform_2(%arg0: i32) -> (i32, i32) {
    %c0_i32 = arith.constant 0 : i32
    %c0_i32_0 = arith.constant 0 : i32
    return %c0_i32, %arg0 : i32, i32
  }
  func.func @transform_3(%arg0: i32) -> (i32, i32) {
    %c0_i32 = arith.constant 0 : i32
    %c0_i32_0 = arith.constant 0 : i32
    return %c0_i32, %arg0 : i32, i32
  }
}

</mosaic_0001>

<llo_original>
// kernel: tpu_custom_call.1
$region0: #{tpu_custom_call.1}
  #allocation0 [shape = 'u32[]', space=smem, size = 0x4, offset = 0x4, fixed_abs, tag = 'smem constant byte address 0x4 - core index']
  #allocation1 [shape = 'u32[144,128]{1,0:T(1,128)}', space=vmem, size = 0x12000, scoped, tag = 'internal scratch']
  #allocation2 [shape = 'f32[1]{0:T(128)S(6)}', space=smem, size = 0x200, scoped, tag = 'scoped memory for tpu_custom_call.1']
  %s0 = inlined_call_operand.vmem [shape: f32[32,1], index: 0, kind: input, shape index: {}]
  %s1 = inlined_call_operand.<no memory space> [shape: f32[1], index: 1, kind: input, shape index: {}]
  %s2 = inlined_call_operand.vmem [shape: f32[32,128], index: 2, kind: input, shape index: {}]
  %s3 = inlined_call_operand.hbm [shape: f32[1,128], index: 3, kind: output, shape index: {}]
  %s4 = sld [smem:[#allocation0]]
  $region22: #{tpu_custom_call.1} parent=0
    _
  %s6 = ssub.s32 1, %s4
  %s7 = scalar_select 0, %s6, %s4
  %8 = sst [smem:[#allocation2]] %s1
  $region1: #{tpu_custom_call.1} parent=0
    #allocation3 [shape = 'u8[512]{0}', space=vmem, size = 0x400, scoped, tag = 'output window, operand 0, single buffered']
    #allocation4 [shape = 's32[1]{0}', space=sflag, size = 0x4, scoped, tag = 'scoped memory for tpu_custom_call.1']
    %9 = vsyncpa [#allocation4], 0
    // Predicated region
    $region2: #{tpu_custom_call.1} parent=1 // pred_check
      _
    $region3: #{tpu_custom_call.1} parent=1 // pred_check_branch
      %11 = sbr.rel (0) target = $region5
    $region4: #{tpu_custom_call.1} parent=1 // pred_region
      _
    $region5: #{tpu_custom_call.1} parent=1 // pred_fallthru
      _
    // Predicated region
    $region6: #{tpu_custom_call.1} parent=1 // pred_check
      _
    $region7: #{tpu_custom_call.1} parent=1 // pred_check_branch
      %13 = sbr.rel (0) target = $region9
    $region8: #{tpu_custom_call.1} parent=1 // pred_region
      _
    $region9: #{tpu_custom_call.1} parent=1 // pred_fallthru
      _
    // Predicated region
    $region10: #{tpu_custom_call.1} parent=1 // pred_check
      _
    $region11: #{tpu_custom_call.1} parent=1 // pred_check_branch
      %15 = sbr.rel (0) target = $region13
    $region12: #{tpu_custom_call.1} parent=1 // pred_region
      _
    $region13: #{tpu_custom_call.1} parent=1 // pred_fallthru
      _
    %v16 = vld [vmem:[%s2] sm:$0xff]
    %v17 = vld [vmem:[%s2 + $0x8] sm:$0xff]
    %v18 = vld [vmem:[%s2 + $0x10] sm:$0xff]
    %v19 = vld [vmem:[%s2 + $0x18] sm:$0xff]
    %v20 = vmax.f32 %v16, 0.0
    %v21 = vmax.f32 %v17, 0.0
    %v22 = vmax.f32 %v18, 0.0
    %v23 = vmax.f32 %v19, 0.0
    %v24 = vld [vmem:[%s0] sm:$0xff]
    %v25 = vld [vmem:[%s0 + $0x8] sm:$0xff]
    %v26 = vld [vmem:[%s0 + $0x10] sm:$0xff]
    %v27 = vld [vmem:[%s0 + $0x18] sm:$0xff]
    %29 = vset.pattern.permute.xlu0 0
    %30 = vperm.xlu0 %29, %v24
    %v31 = vpop.permute.xlu0 %30
    %34 = vset.pattern.permute.xlu0 0
    %35 = vperm.xlu0 %34, %v25
    %v36 = vpop.permute.xlu0 %35
    %39 = vset.pattern.permute.xlu0 0
    %40 = vperm.xlu0 %39, %v26
    %v41 = vpop.permute.xlu0 %40
    %44 = vset.pattern.permute.xlu0 0
    %45 = vperm.xlu0 %44, %v27
    %v46 = vpop.permute.xlu0 %45
    %v48 = vmul.f32 %v20, %v31
    %v49 = vmul.f32 %v21, %v36
    %v50 = vmul.f32 %v22, %v41
    %v51 = vmul.f32 %v23, %v46
    %v52 = vadd.f32 %v48, %v49
    %v53 = vadd.f32 %v52, %v50
    %v54 = vadd.f32 %v53, %v51
    %v55 = vrot.slane %v54, 4
    %v56 = vadd.f32 %v54, %v55
    %v57 = vrot.slane %v56, 2
    %v58 = vadd.f32 %v56, %v57
    %v59 = vrot.slane %v58, 1
    %v60 = vadd.f32 %v58, %v59
    %s61 = sld [smem:[#allocation2]]
    %v62 = vstv %s61
    %v63 = vadd.f32 %v60, %v62
    %64 = vst [vmem:[#allocation3] sm:$0x1] %v63
    // Predicated region
    $region14: #{tpu_custom_call.1} parent=1 // pred_check
      _
    $region15: #{tpu_custom_call.1} parent=1 // pred_check_branch
      %66 = sbr.rel (0) target = $region17
    $region16: #{tpu_custom_call.1} parent=1 // pred_region
      %s68 = ssub.s32 16, 16
      %69 = vsyncadd [#allocation4], %s68
      %s71 = sshll.u32 [#allocation3], 4
      %s72 = int_to_ptr.vmem [resolvable:$true] %s71
      %74 = dma.vmem_to_hbm [thread:$0]  %s72, 16, %s3, [#allocation4]
    $region17: #{tpu_custom_call.1} parent=1 // pred_fallthru
      _
    // Predicated region
    $region18: #{tpu_custom_call.1} parent=1 // pred_check
      _
    $region19: #{tpu_custom_call.1} parent=1 // pred_check_branch
      %76 = sbr.rel (0) target = $region21
    $region20: #{tpu_custom_call.1} parent=1 // pred_region
      %77 = dma.done [#allocation4], 16
    $region21: #{tpu_custom_call.1} parent=1 // pred_fallthru
      _
    %78 = vsyncpa [#allocation4], 1

</llo_original>
